<compile_context>
chip_gen: v6e
topology: v6e:2x2x1
jax: 0.10.0
libtpu: 0.0.40
codegen_flags: <defaults>
</compile_context>

<pallas_src>
import math

import jax
import jax.numpy as jnp
from jax import lax
from jax.experimental import pallas as pl
from jax.experimental.pallas import tpu as pltpu

BETA = 1.0
HIDDEN1 = 3
LX = 30
NUM_LABELS = 2
LABELS_PAD = 8  # sublane-padded label count for the transposed (labels, batch) output


def red_mlp_kernel(x_ref, w1t_ref, b1_ref, w2t_ref, b2_ref, o_ref):
    # x arrives as bf16 (+/-1 spins -> lossless); cast on the VPU before the MXU.
    x = x_ref[...].astype(jnp.float32)                              # (bm, F)

    # Layer 1: z1 = x @ W1 + b1, with W1 stored transposed as (H, F).
    # Contraction (1, 1) == trans_b matmul on the MXU.
    z1 = lax.dot_general(
        x, w1t_ref[...],
        dimension_numbers=(((1,), (1,)), ((), ())),
        preferred_element_type=jnp.float32) + b1_ref[...]           # (bm, H)
    a1 = jax.nn.sigmoid(z1)

    # Layer 2, transposed output: z2^T = W2^T_pad @ a1^T  -> (LABELS_PAD, bm).
    # Rows >= NUM_LABELS have zero weights/bias and are sliced away in the
    # wrapper; the store stays unmasked and lane-dense (bm lanes).
    z2t = lax.dot_general(
        w2t_ref[...], a1,
        dimension_numbers=(((1,), (1,)), ((), ())),
        preferred_element_type=jnp.float32) + b2_ref[...]           # (LABELS_PAD, bm)
    o_ref[...] = jax.nn.sigmoid(z2t).astype(o_ref.dtype)


def red_forward(x, W1, b1, W2, b2, *, bm=None):
    """Pallas forward of the `red` module.

    x:  (B, LX*LX) float32 (values +/-1)
    W1: (LX*LX, HIDDEN1), b1: (HIDDEN1,)
    W2: (HIDDEN1, NUM_LABELS), b2: (NUM_LABELS,)
    returns (B, NUM_LABELS) float32
    """
    B, F = x.shape
    H = W1.shape[1]
    L = W2.shape[1]
    LP = LABELS_PAD

    # ---- batch tiling ----------------------------------------------------
    if bm is None:
        # Aim for ~8 grid steps (>= 2 per v7x TensorCore, good pipelining on
        # 1-TC chips), cap at 512 rows, floor at 128 so the transposed-output
        # lane dim stays a multiple of 128.
        bm = min(512, max(128, (B // (8 * 128)) * 128))
    if bm >= B:
        bm_eff, grid_b = B, 1                  # single full-array tile
    else:
        bm_eff = max(128, (bm // 128) * 128)   # lane-dense output tiles
        grid_b = pl.cdiv(B, bm_eff)
    B_pad = grid_b * bm_eff

    # ---- operand prep ------------------------------------------------------
    # Ising spins are exactly +/-1: bf16 is a lossless 2x compression of the
    # dominant HBM stream.  Weights/biases stay f32.
    x_c = x.astype(jnp.bfloat16)
    if B_pad != B:
        x_c = jnp.pad(x_c, ((0, B_pad - B), (0, 0)))

    # BETA folded into the weights (exact; removes two per-tile VPU multiplies).
    w1t = (BETA * W1).astype(jnp.float32).T                          # (H, F)
    b1_2d = b1.astype(jnp.float32).reshape(1, H)
    w2t_p = jnp.zeros((LP, H), jnp.float32).at[:L].set(
        (BETA * W2).astype(jnp.float32).T)                           # (LP, H)
    b2_p = jnp.zeros((LP, 1), jnp.float32).at[:L, 0].set(
        b2.astype(jnp.float32))                                      # (LP, 1)

    flops = 2 * B_pad * F * H + 2 * B_pad * H * LP
    transcendentals = B_pad * (H + LP)
    bytes_accessed = (2 * B_pad * F                       # bf16 x stream
                      + 4 * (H * F + H + LP * H + LP)     # f32 params
                      + 4 * LP * B_pad)                   # transposed f32 output

    out_t = pl.pallas_call(
        red_mlp_kernel,
        out_shape=jax.ShapeDtypeStruct((LP, B_pad), jnp.float32),
        grid=(grid_b,),
        in_specs=[
            pl.BlockSpec((bm_eff, F), lambda i: (i, 0)),   # x batch tile (bf16)
            pl.BlockSpec((H, F), lambda i: (0, 0)),        # W1^T (resident, ~32 KiB)
            pl.BlockSpec((1, H), lambda i: (0, 0)),        # b1
            pl.BlockSpec((LP, H), lambda i: (0, 0)),       # W2^T, zero-padded rows
            pl.BlockSpec((LP, 1), lambda i: (0, 0)),       # b2, zero-padded rows
        ],
        out_specs=pl.BlockSpec((LP, bm_eff), lambda i: (0, i)),
        compiler_params=pltpu.CompilerParams(
            dimension_semantics=("parallel",)),
        cost_estimate=pl.CostEstimate(
            flops=flops,
            transcendentals=transcendentals,
            bytes_accessed=bytes_accessed),
    )(x_c, w1t, b1_2d, w2t_p, b2_p)

    # (LP, B_pad) -> (B, L): tiny slice + transpose in the wrapper.
    return out_t[:L, :B].T


def red_forward_ref(x, W1, b1, W2, b2):
    hp = lax.Precision.HIGHEST
    z1 = BETA * jnp.dot(x, W1, precision=hp) + b1
    a1 = jax.nn.sigmoid(z1)
    z2 = BETA * jnp.dot(a1, W2, precision=hp) + b2
    return jax.nn.sigmoid(z2)


if __name__ == "__main__":
    key = jax.random.PRNGKey(0)
    k_x, k_w1, k_w2 = jax.random.split(key, 3)

    B = 512                     # auto bm=128 -> grid=4 (>=2 steps per v7x TC)
    F = LX * LX                 # 900 flattened Ising spins

    # Deterministic "Ising-like" +/-1 input and torch-style weight init.
    x = jnp.sign(jax.random.normal(k_x, (B, F), dtype=jnp.float32))
    W1 = jax.random.normal(k_w1, (F, HIDDEN1), dtype=jnp.float32) / math.sqrt(F)
    b1 = jnp.zeros((HIDDEN1,), dtype=jnp.float32)
    W2 = jax.random.normal(k_w2, (HIDDEN1, NUM_LABELS),
                           dtype=jnp.float32) / math.sqrt(HIDDEN1)
    b2 = jnp.zeros((NUM_LABELS,), dtype=jnp.float32)

    ref = red_forward_ref(x, W1, b1, W2, b2)

    # Multi-tile path (grid=4).
    out = jax.block_until_ready(red_forward(x, W1, b1, W2, b2))
    assert out.shape == (B, NUM_LABELS)
    assert jnp.allclose(out, ref, atol=5e-3, rtol=5e-3), "mismatch vs JAX reference"

    # Non-divisible multi-tile path (grid=3, batch padded 300 -> 384).
    out_mid = jax.block_until_ready(red_forward(x[:300], W1, b1, W2, b2, bm=128))
    assert out_mid.shape == (300, NUM_LABELS)
    assert jnp.allclose(out_mid, ref[:300], atol=5e-3, rtol=5e-3), \
        "mismatch vs JAX reference (padded batch)"

    # Tiny single-tile path (full-array block, no padding needed).
    out_small = jax.block_until_ready(red_forward(x[:10], W1, b1, W2, b2))
    assert out_small.shape == (10, NUM_LABELS)
    assert jnp.allclose(out_small, ref[:10], atol=5e-3, rtol=5e-3), \
        "mismatch vs JAX reference (small batch)"

    print("KERNEL_OK")
</pallas_src>

<mosaic_0001>
module attributes {stable_mosaic.version = 11 : i64} {
  func.func @red_mlp_kernel(%arg0: i32, %arg1: memref<128x900xbf16, #tpu.memory_space<vmem>>, %arg2: memref<3x900xf32, #tpu.memory_space<vmem>>, %arg3: memref<1x3xf32, #tpu.memory_space<vmem>>, %arg4: memref<8x3xf32, #tpu.memory_space<vmem>>, %arg5: memref<8x1xf32, #tpu.memory_space<vmem>>, %arg6: memref<8x128xf32, #tpu.memory_space<vmem>>) attributes {dimension_semantics = [#tpu.dimension_semantics<parallel>], iteration_bounds = array<i64: 4>, scalar_prefetch = 0 : i64, scratch_operands = 0 : i64, tpu.core_type = #tpu.core_type<tc>, window_params = [{transform_indices = @transform_0, window_bounds = array<i64: 128, 900>}, {pipeline_mode = #tpu.pipeline_mode<synchronous>, transform_indices = @transform_1, window_bounds = array<i64: 3, 900>}, {pipeline_mode = #tpu.pipeline_mode<synchronous>, transform_indices = @transform_2, window_bounds = array<i64: 1, 3>}, {pipeline_mode = #tpu.pipeline_mode<synchronous>, transform_indices = @transform_3, window_bounds = array<i64: 8, 3>}, {pipeline_mode = #tpu.pipeline_mode<synchronous>, transform_indices = @transform_4, window_bounds = array<i64: 8, 1>}, {transform_indices = @transform_5, window_bounds = array<i64: 8, 128>}]} {
    %c0 = arith.constant 0 : index
    %c0_0 = arith.constant 0 : index
    %0 = vector.load %arg1[%c0, %c0_0] : memref<128x900xbf16, #tpu.memory_space<vmem>>, vector<128x900xbf16>
    %1 = arith.extf %0 : vector<128x900xbf16> to vector<128x900xf32>
    %c0_1 = arith.constant 0 : index
    %c0_2 = arith.constant 0 : index
    %2 = vector.load %arg2[%c0_1, %c0_2] : memref<3x900xf32, #tpu.memory_space<vmem>>, vector<3x900xf32>
    %cst = arith.constant dense<0.000000e+00> : vector<128x3xf32>
    %3 = tpu.matmul %1, %2, %cst {dimension_numbers = #tpu.dot_dimension_numbers<[1], [1], [0], [0], [0, 0, 1, 0], [], []>} : vector<128x900xf32>, vector<3x900xf32>, vector<128x3xf32> -> vector<128x3xf32>
    %c0_3 = arith.constant 0 : index
    %c0_4 = arith.constant 0 : index
    %4 = vector.load %arg3[%c0_3, %c0_4] : memref<1x3xf32, #tpu.memory_space<vmem>>, vector<1x3xf32>
    %5 = vector.broadcast %4 : vector<1x3xf32> to vector<128x3xf32>
    %6 = arith.addf %3, %5 : vector<128x3xf32>
    %7 = arith.negf %6 : vector<128x3xf32>
    %8 = math.exp %7 : vector<128x3xf32>
    %cst_5 = arith.constant 1.000000e+00 : f32
    %9 = vector.broadcast %cst_5 : f32 to vector<128x3xf32>
    %10 = arith.addf %9, %8 : vector<128x3xf32>
    %11 = arith.divf %9, %10 : vector<128x3xf32>
    %c0_6 = arith.constant 0 : index
    %c0_7 = arith.constant 0 : index
    %12 = vector.load %arg4[%c0_6, %c0_7] : memref<8x3xf32, #tpu.memory_space<vmem>>, vector<8x3xf32>
    %cst_8 = arith.constant dense<0.000000e+00> : vector<8x128xf32>
    %13 = tpu.matmul %12, %11, %cst_8 {dimension_numbers = #tpu.dot_dimension_numbers<[1], [1], [0], [0], [0, 0, 1, 0], [], []>} : vector<8x3xf32>, vector<128x3xf32>, vector<8x128xf32> -> vector<8x128xf32>
    %c0_9 = arith.constant 0 : index
    %c0_10 = arith.constant 0 : index
    %14 = vector.load %arg5[%c0_9, %c0_10] : memref<8x1xf32, #tpu.memory_space<vmem>>, vector<8x1xf32>
    %15 = vector.broadcast %14 : vector<8x1xf32> to vector<8x128xf32>
    %16 = arith.addf %13, %15 : vector<8x128xf32>
    %17 = arith.negf %16 : vector<8x128xf32>
    %18 = math.exp %17 : vector<8x128xf32>
    %cst_11 = arith.constant 1.000000e+00 : f32
    %19 = vector.broadcast %cst_11 : f32 to vector<8x128xf32>
    %20 = arith.addf %19, %18 : vector<8x128xf32>
    %21 = arith.divf %19, %20 : vector<8x128xf32>
    %c0_12 = arith.constant 0 : index
    %c0_13 = arith.constant 0 : index
    %22 = vector.load %arg6[%c0_12, %c0_13] : memref<8x128xf32, #tpu.memory_space<vmem>>, vector<8x128xf32>
    tpu.vector_store %arg6[%c0_12, %c0_13], %21 {strides = array<i32>} : memref<8x128xf32, #tpu.memory_space<vmem>>, vector<8x128xf32>,
    return
  }
  func.func @transform_0(%arg0: i32) -> (i32, i32) {
    %c0_i32 = arith.constant 0 : i32
    %c0_i32_0 = arith.constant 0 : i32
    return %arg0, %c0_i32 : i32, i32
  }
  func.func @transform_1(%arg0: i32) -> (i32, i32) {
    %c0_i32 = arith.constant 0 : i32
    %c0_i32_0 = arith.constant 0 : i32
    %c0_i32_1 = arith.constant 0 : i32
    return %c0_i32, %c0_i32_0 : i32, i32
  }
  func.func @transform_2(%arg0: i32) -> (i32, i32) {
    %c0_i32 = arith.constant 0 : i32
    %c0_i32_0 = arith.constant 0 : i32
    %c0_i32_1 = arith.constant 0 : i32
    return %c0_i32, %c0_i32_0 : i32, i32
  }
  func.func @transform_3(%arg0: i32) -> (i32, i32) {
    %c0_i32 = arith.constant 0 : i32
    %c0_i32_0 = arith.constant 0 : i32
    %c0_i32_1 = arith.constant 0 : i32
    return %c0_i32, %c0_i32_0 : i32, i32
  }
  func.func @transform_4(%arg0: i32) -> (i32, i32) {
    %c0_i32 = arith.constant 0 : i32
    %c0_i32_0 = arith.constant 0 : i32
    %c0_i32_1 = arith.constant 0 : i32
    return %c0_i32, %c0_i32_0 : i32, i32
  }
  func.func @transform_5(%arg0: i32) -> (i32, i32) {
    %c0_i32 = arith.constant 0 : i32
    %c0_i32_0 = arith.constant 0 : i32
    return %c0_i32, %arg0 : i32, i32
  }
}

</mosaic_0001>

<llo_original>
// kernel: tpu_custom_call.1
$region0: #{tpu_custom_call.1}
  #allocation0 [shape = 'u32[]', space=smem, size = 0x4, offset = 0x4, fixed_abs, tag = 'smem constant byte address 0x4 - core index']
  #allocation1 [shape = 'u32[144,128]{1,0:T(1,128)}', space=vmem, size = 0x12000, scoped, tag = 'internal scratch']
  %s0 = inlined_call_operand.vmem [shape: bf16[512,900], index: 0, kind: input, shape index: {}]
  %s1 = inlined_call_operand.vmem [shape: f32[3,900], index: 1, kind: input, shape index: {}]
  %s2 = inlined_call_operand.vmem [shape: f32[1,3], index: 2, kind: input, shape index: {}]
  %s3 = inlined_call_operand.vmem [shape: f32[8,3], index: 3, kind: input, shape index: {}]
  %s4 = inlined_call_operand.vmem [shape: f32[8,1], index: 4, kind: input, shape index: {}]
  %s5 = inlined_call_operand.hbm [shape: f32[8,512], index: 5, kind: output, shape index: {}]
  %s6 = sld [smem:[#allocation0]]
  $region53: #{tpu_custom_call.1} parent=0
    _
  %s8 = ssub.s32 1, %s6
  %s9 = scalar_select 0, %s8, %s6
  $region1: #{tpu_custom_call.1} parent=0
    #allocation2 [shape = 'u8[8192]{0}', space=vmem, size = 0x2000, scoped, tag = 'output window, operand 0']
    #allocation3 [shape = 's32[2]{0}', space=sflag, size = 0x8, scoped, tag = 'scoped memory for tpu_custom_call.1']
    %10 = vsyncpa [#allocation3], 0
    %s11 = scalar_lea.sflag [#allocation3], 1
    %12 = vsyncpa %s11, 0
    loop: start=0, step=1, limit=6
    $region2: #{tpu_custom_call.1} parent=1 // loop_pre_header
      _
    $region3: #{tpu_custom_call.1} parent=1 // loop_header
      %s14 = sphi 0, %s18
      %p15 = scmp.ge.s32.totalorder %s14, 6
      %s24 = sphi 0, %s26
      %s27 = sphi 0, %s24
      %s28 = sphi 0, %s27
      %s44 = sphi 0, %s28
      %s48 = sphi 0, %s48
      %s50 = sphi 0, %s48
      %s51 = sphi 0, %s50
      %s65 = sphi 0, %s51
      %s69 = sphi 0, %s69
      %s71 = sphi 0, %s69
      %s72 = sphi 0, %s71
      %s86 = sphi 0, %s72
      %s90 = sphi 0, %s90
      %s92 = sphi 0, %s90
      %s93 = sphi 0, %s92
      %s107 = sphi 0, %s93
      %s111 = sphi 0, %s111
      %s113 = sphi 0, %s111
      %s114 = sphi 0, %s113
      %s128 = sphi 0, %s114
      %s134 = sphi 0, %s136
      %s137 = sphi 0, %s134
      %s138 = sphi 0, %s137
      %s154 = sphi 0, %s138
    $region4: #{tpu_custom_call.1} parent=1 // loop_header_branch
      %17 = sbr.rel (%p15) target = $region8
    $region5: #{tpu_custom_call.1} parent=1 // loop_body
      %s19 = ssub.s32 %s14, 1
      %s20 = ssub.s32 %s14, 2
      %s21 = sadd.s32 %s14, 1
      %s22 = ssub.s32 %s14, %s21
      %p23 = scmp.eq.s32.totalorder %s22, 0
      %s25 = sadd.s32 %s24, 1
      %s26 = scalar_select %p23, %s24, %s25
      %p29 = pneg %p23
      %p30 = scmp.eq.s32.totalorder %s14, 3
      %p31 = por %p29, %p30
      %p32 = scmp.ne.s32.totalorder %s24, %s27
      %p33 = scmp.eq.s32.totalorder %s14, 0
      %p34 = por %p32, %p33
      %p35 = scmp.ne.s32.totalorder %s24, %s27
      %p36 = scmp.eq.s32.totalorder %s19, 3
      %p37 = por %p35, %p36
      %p38 = scmp.ne.s32.totalorder %s27, %s28
      %p39 = scmp.eq.s32.totalorder %s19, 0
      %p40 = por %p38, %p39
      %p41 = scmp.ne.s32.totalorder %s27, %s28
      %p42 = scmp.eq.s32.totalorder %s20, 3
      %p43 = por %p41, %p42
      %p45 = scmp.ne.s32.totalorder %s28, %s44
      %p46 = scmp.eq.s32.totalorder %s20, 0
      %p47 = por %p45, %p46
      %s49 = sadd.s32 %s48, 1
      %p52 = scmp.eq.s32.totalorder %s14, 3
      %p53 = scmp.ne.s32.totalorder %s48, %s50
      %p54 = scmp.eq.s32.totalorder %s14, 0
      %p55 = por %p53, %p54
      %p56 = scmp.ne.s32.totalorder %s48, %s50
      %p57 = scmp.eq.s32.totalorder %s19, 3
      %p58 = por %p56, %p57
      %p59 = scmp.ne.s32.totalorder %s50, %s51
      %p60 = scmp.eq.s32.totalorder %s19, 0
      %p61 = por %p59, %p60
      %p62 = scmp.ne.s32.totalorder %s50, %s51
      %p63 = scmp.eq.s32.totalorder %s20, 3
      %p64 = por %p62, %p63
      %p66 = scmp.ne.s32.totalorder %s51, %s65
      %p67 = scmp.eq.s32.totalorder %s20, 0
      %p68 = por %p66, %p67
      %s70 = sadd.s32 %s69, 1
      %p73 = scmp.eq.s32.totalorder %s14, 3
      %p74 = scmp.ne.s32.totalorder %s69, %s71
      %p75 = scmp.eq.s32.totalorder %s14, 0
      %p76 = por %p74, %p75
      %p77 = scmp.ne.s32.totalorder %s69, %s71
      %p78 = scmp.eq.s32.totalorder %s19, 3
      %p79 = por %p77, %p78
      %p80 = scmp.ne.s32.totalorder %s71, %s72
      %p81 = scmp.eq.s32.totalorder %s19, 0
      %p82 = por %p80, %p81
      %p83 = scmp.ne.s32.totalorder %s71, %s72
      %p84 = scmp.eq.s32.totalorder %s20, 3
      %p85 = por %p83, %p84
      %p87 = scmp.ne.s32.totalorder %s72, %s86
      %p88 = scmp.eq.s32.totalorder %s20, 0
      %p89 = por %p87, %p88
      %s91 = sadd.s32 %s90, 1
      %p94 = scmp.eq.s32.totalorder %s14, 3
      %p95 = scmp.ne.s32.totalorder %s90, %s92
      %p96 = scmp.eq.s32.totalorder %s14, 0
      %p97 = por %p95, %p96
      %p98 = scmp.ne.s32.totalorder %s90, %s92
      %p99 = scmp.eq.s32.totalorder %s19, 3
      %p100 = por %p98, %p99
      %p101 = scmp.ne.s32.totalorder %s92, %s93
      %p102 = scmp.eq.s32.totalorder %s19, 0
      %p103 = por %p101, %p102
      %p104 = scmp.ne.s32.totalorder %s92, %s93
      %p105 = scmp.eq.s32.totalorder %s20, 3
      %p106 = por %p104, %p105
      %p108 = scmp.ne.s32.totalorder %s93, %s107
      %p109 = scmp.eq.s32.totalorder %s20, 0
      %p110 = por %p108, %p109
      %s112 = sadd.s32 %s111, 1
      %p115 = scmp.eq.s32.totalorder %s14, 3
      %p116 = scmp.ne.s32.totalorder %s111, %s113
      %p117 = scmp.eq.s32.totalorder %s14, 0
      %p118 = por %p116, %p117
      %p119 = scmp.ne.s32.totalorder %s111, %s113
      %p120 = scmp.eq.s32.totalorder %s19, 3
      %p121 = por %p119, %p120
      %p122 = scmp.ne.s32.totalorder %s113, %s114
      %p123 = scmp.eq.s32.totalorder %s19, 0
      %p124 = por %p122, %p123
      %p125 = scmp.ne.s32.totalorder %s113, %s114
      %p126 = scmp.eq.s32.totalorder %s20, 3
      %p127 = por %p125, %p126
      %p129 = scmp.ne.s32.totalorder %s114, %s128
      %p130 = scmp.eq.s32.totalorder %s20, 0
      %p131 = por %p129, %p130
      %s132 = ssub.s32 %s14, %s21
      %p133 = scmp.eq.s32.totalorder %s132, 0
      %s135 = sadd.s32 %s134, 1
      %s136 = scalar_select %p133, %s134, %s135
      %p139 = pneg %p133
      %p140 = scmp.eq.s32.totalorder %s14, 3
      %p141 = por %p139, %p140
      %p142 = scmp.ne.s32.totalorder %s134, %s137
      %p143 = scmp.eq.s32.totalorder %s14, 0
      %p144 = por %p142, %p143
      %p145 = scmp.ne.s32.totalorder %s134, %s137
      %p146 = scmp.eq.s32.totalorder %s19, 3
      %p147 = por %p145, %p146
      %p148 = scmp.ne.s32.totalorder %s137, %s138
      %p149 = scmp.eq.s32.totalorder %s19, 0
      %p150 = por %p148, %p149
      %p151 = scmp.ne.s32.totalorder %s137, %s138
      %p152 = scmp.eq.s32.totalorder %s20, 3
      %p153 = por %p151, %p152
      %p155 = scmp.ne.s32.totalorder %s138, %s154
      %p156 = scmp.eq.s32.totalorder %s20, 0
      %p157 = por %p155, %p156
      %p158 = scmp.le.s32.totalorder 1, %s14
      %p159 = scmp.lt.s32.totalorder %s14, 5
      %p160 = pnand %p158, %p159
      %p161 = pneg %p160
      // Predicated region
      $region9: #{tpu_custom_call.1} parent=5 // pred_check
        _
      $region10: #{tpu_custom_call.1} parent=5 // pred_check_branch
        %163 = sbr.rel (%p160) target = $region12
      $region11: #{tpu_custom_call.1} parent=5 // pred_region
        %s164 = ssub.s32 %s14, 1
        // Predicated region
        $region13: #{tpu_custom_call.1} parent=11 // pred_check
          %p165 = pneg %p61
        $region14: #{tpu_custom_call.1} parent=11 // pred_check_branch
          %167 = sbr.rel (%p165) target = $region16
        $region15: #{tpu_custom_call.1} parent=11 // pred_region
          _
        $region16: #{tpu_custom_call.1} parent=11 // pred_fallthru
          _
        // Predicated region
        $region17: #{tpu_custom_call.1} parent=11 // pred_check
          %p168 = pneg %p82
        $region18: #{tpu_custom_call.1} parent=11 // pred_check_branch
          %170 = sbr.rel (%p168) target = $region20
        $region19: #{tpu_custom_call.1} parent=11 // pred_region
          _
        $region20: #{tpu_custom_call.1} parent=11 // pred_fallthru
          _
        // Predicated region
        $region21: #{tpu_custom_call.1} parent=11 // pred_check
          %p171 = pneg %p103
        $region22: #{tpu_custom_call.1} parent=11 // pred_check_branch
          %173 = sbr.rel (%p171) target = $region24
        $region23: #{tpu_custom_call.1} parent=11 // pred_region
          _
        $region24: #{tpu_custom_call.1} parent=11 // pred_fallthru
          _
        // Predicated region
        $region25: #{tpu_custom_call.1} parent=11 // pred_check
          %p174 = pneg %p124
        $region26: #{tpu_custom_call.1} parent=11 // pred_check_branch
          %176 = sbr.rel (%p174) target = $region28
        $region27: #{tpu_custom_call.1} parent=11 // pred_region
          _
        $region28: #{tpu_custom_call.1} parent=11 // pred_fallthru
          _
      $region12: #{tpu_custom_call.1} parent=5 // pred_fallthru
        _
      %p177 = scmp.lt.s32.totalorder %s14, 4
      // Predicated region
      $region29: #{tpu_custom_call.1} parent=5 // pred_check
        %p178 = pneg %p177
      $region30: #{tpu_custom_call.1} parent=5 // pred_check_branch
        %180 = sbr.rel (%p178) target = $region32
      $region31: #{tpu_custom_call.1} parent=5 // pred_region
        // Predicated region
        $region33: #{tpu_custom_call.1} parent=31 // pred_check
          %p181 = pneg %p34
        $region34: #{tpu_custom_call.1} parent=31 // pred_check_branch
          %183 = sbr.rel (%p181) target = $region36
        $region35: #{tpu_custom_call.1} parent=31 // pred_region
          %s184 = smul.u32 16, %s14
          %p185 = scmp.lt.s32.totalorder %s184, 63
          %s186 = scalar_select %p185, %s184, 63
          %s187 = smul.addr %s186, 8
          %s188 = smul.addr %s187, 4
          %s189 = scalar_lea.vmem %s0, %s188
          %s190 = smul.u32 16, %s14
        $region36: #{tpu_custom_call.1} parent=31 // pred_fallthru
          _
      $region32: #{tpu_custom_call.1} parent=5 // pred_fallthru
        _
      %p191 = scmp.le.s32.totalorder 1, %s14
      %p192 = scmp.lt.s32.totalorder %s14, 5
      %p193 = pnand %p191, %p192
      %p194 = pneg %p193
      // Predicated region
      $region37: #{tpu_custom_call.1} parent=5 // pred_check
        _
      $region38: #{tpu_custom_call.1} parent=5 // pred_check_branch
        %196 = sbr.rel (%p193) target = $region40
      $region39: #{tpu_custom_call.1} parent=5 // pred_region
        %s197 = ssub.s32 %s14, 1
        %s198 = smul.u32 16, %s19
        %p199 = scmp.lt.s32.totalorder %s198, 63
        %s200 = scalar_select %p199, %s198, 63
        %s201 = smul.addr %s200, 8
        %s202 = smul.addr %s201, 4
        %s203 = scalar_lea.vmem %s0, %s202
        %p204 = pneg %p40
        %p205 = pneg %p37
        %p206 = pneg %p61
        %p207 = pneg %p58
        %p208 = pneg %p82
        %p209 = pneg %p79
        %p210 = pneg %p103
        %p211 = pneg %p100
        %p212 = pneg %p124
        %p213 = pneg %p121
        %p214 = pneg %p150
        %p215 = pneg %p147
        %s216 = sand.u32 %s137, 1
        %s217 = scalar_lea.sflag [#allocation3], %s216
        %s218 = sand.u32 %s137, 1
        %s219 = smul.addr %s218, 8
        %s220 = scalar_lea.vmem [#allocation2], %s219
        %s221 = smul.u32 16, %s19
        %p222 = scmp.lt.s32.totalorder %s221, 63
        %s223 = scalar_select %p222, %s221, 63
        %s224 = smul.addr %s223, 8
        %s225 = smul.addr %s224, 4
        %s226 = scalar_lea.vmem %s0, %s225
        %s227 = smul.u32 16, %s19
        %v228 = vld [vmem:[%s226] sm:$0xff]
        %v229 = vld [vmem:[%s226 + $0x8] sm:$0xff]
        %v230 = vld [vmem:[%s226 + $0x10] sm:$0xff]
        %v231 = vld [vmem:[%s226 + $0x18] sm:$0xff]
        %v232 = vld [vmem:[%s226 + $0x20] sm:$0xff]
        %v233 = vld [vmem:[%s226 + $0x28] sm:$0xff]
        %v234 = vld [vmem:[%s226 + $0x30] sm:$0xff]
        %v235 = vld [vmem:[%s226 + $0x38] sm:$0xff]
        %v236 = vld [vmem:[%s226 + $0x40] sm:$0xff]
        %v237 = vld [vmem:[%s226 + $0x48] sm:$0xff]
        %v238 = vld [vmem:[%s226 + $0x50] sm:$0xff]
        %v239 = vld [vmem:[%s226 + $0x58] sm:$0xff]
        %v240 = vld [vmem:[%s226 + $0x60] sm:$0xff]
        %v241 = vld [vmem:[%s226 + $0x68] sm:$0xff]
        %v242 = vld [vmem:[%s226 + $0x70] sm:$0xff]
        %v243 = vld [vmem:[%s226 + $0x78] sm:$0xff]
        %v244 = vld [vmem:[%s226 + $0x80] sm:$0xff]
        %v245 = vld [vmem:[%s226 + $0x88] sm:$0xff]
        %v246 = vld [vmem:[%s226 + $0x90] sm:$0xff]
        %v247 = vld [vmem:[%s226 + $0x98] sm:$0xff]
        %v248 = vld [vmem:[%s226 + $0xa0] sm:$0xff]
        %v249 = vld [vmem:[%s226 + $0xa8] sm:$0xff]
        %v250 = vld [vmem:[%s226 + $0xb0] sm:$0xff]
        %v251 = vld [vmem:[%s226 + $0xb8] sm:$0xff]
        %v252 = vld [vmem:[%s226 + $0xc0] sm:$0xff]
        %v253 = vld [vmem:[%s226 + $0xc8] sm:$0xff]
        %v254 = vld [vmem:[%s226 + $0xd0] sm:$0xff]
        %v255 = vld [vmem:[%s226 + $0xd8] sm:$0xff]
        %v256 = vld [vmem:[%s226 + $0xe0] sm:$0xff]
        %v257 = vld [vmem:[%s226 + $0xe8] sm:$0xff]
        %v258 = vld [vmem:[%s226 + $0xf0] sm:$0xff]
        %v259 = vld [vmem:[%s226 + $0xf8] sm:$0xff]
        %v260 = vld [vmem:[%s226 + $0x100] sm:$0xff]
        %v261 = vld [vmem:[%s226 + $0x108] sm:$0xff]
        %v262 = vld [vmem:[%s226 + $0x110] sm:$0xff]
        %v263 = vld [vmem:[%s226 + $0x118] sm:$0xff]
        %v264 = vld [vmem:[%s226 + $0x120] sm:$0xff]
        %v265 = vld [vmem:[%s226 + $0x128] sm:$0xff]
        %v266 = vld [vmem:[%s226 + $0x130] sm:$0xff]
        %v267 = vld [vmem:[%s226 + $0x138] sm:$0xff]
        %v268 = vld [vmem:[%s226 + $0x140] sm:$0xff]
        %v269 = vld [vmem:[%s226 + $0x148] sm:$0xff]
        %v270 = vld [vmem:[%s226 + $0x150] sm:$0xff]
        %v271 = vld [vmem:[%s226 + $0x158] sm:$0xff]
        %v272 = vld [vmem:[%s226 + $0x160] sm:$0xff]
        %v273 = vld [vmem:[%s226 + $0x168] sm:$0xff]
        %v274 = vld [vmem:[%s226 + $0x170] sm:$0xff]
        %v275 = vld [vmem:[%s226 + $0x178] sm:$0xff]
        %v276 = vld [vmem:[%s226 + $0x180] sm:$0xff]
        %v277 = vld [vmem:[%s226 + $0x188] sm:$0xff]
        %v278 = vld [vmem:[%s226 + $0x190] sm:$0xff]
        %v279 = vld [vmem:[%s226 + $0x198] sm:$0xff]
        %v280 = vld [vmem:[%s226 + $0x1a0] sm:$0xff]
        %v281 = vld [vmem:[%s226 + $0x1a8] sm:$0xff]
        %v282 = vld [vmem:[%s226 + $0x1b0] sm:$0xff]
        %v283 = vld [vmem:[%s226 + $0x1b8] sm:$0xff]
        %v284 = vld [vmem:[%s226 + $0x1c0] sm:$0xff]
        %v285 = vld [vmem:[%s226 + $0x1c8] sm:$0xff]
        %v286 = vld [vmem:[%s226 + $0x1d0] sm:$0xff]
        %v287 = vld [vmem:[%s226 + $0x1d8] sm:$0xff]
        %v288 = vld [vmem:[%s226 + $0x1e0] sm:$0xff]
        %v289 = vld [vmem:[%s226 + $0x1e8] sm:$0xff]
        %v290 = vld [vmem:[%s226 + $0x1f0] sm:$0xff]
        %v291 = vld [vmem:[%s226 + $0x1f8] sm:$0xff]
        %v292 = vunpack.c.l.bf16 %v228
        %v293 = vunpack.c.h.bf16 %v228
        %v294 = vunpack.c.l.bf16 %v229
        %v295 = vunpack.c.h.bf16 %v229
        %v296 = vunpack.c.l.bf16 %v230
        %v297 = vunpack.c.h.bf16 %v230
        %v298 = vunpack.c.l.bf16 %v231
        %v299 = vunpack.c.h.bf16 %v231
        %v300 = vunpack.c.l.bf16 %v232
        %v301 = vunpack.c.h.bf16 %v232
        %v302 = vunpack.c.l.bf16 %v233
        %v303 = vunpack.c.h.bf16 %v233
        %v304 = vunpack.c.l.bf16 %v234
        %v305 = vunpack.c.h.bf16 %v234
        %v306 = vunpack.c.l.bf16 %v235
        %v307 = vunpack.c.h.bf16 %v235
        %v308 = vunpack.c.l.bf16 %v236
        %v309 = vunpack.c.h.bf16 %v236
        %v310 = vunpack.c.l.bf16 %v237
        %v311 = vunpack.c.h.bf16 %v237
        %v312 = vunpack.c.l.bf16 %v238
        %v313 = vunpack.c.h.bf16 %v238
        %v314 = vunpack.c.l.bf16 %v239
        %v315 = vunpack.c.h.bf16 %v239
        %v316 = vunpack.c.l.bf16 %v240
        %v317 = vunpack.c.h.bf16 %v240
        %v318 = vunpack.c.l.bf16 %v241
        %v319 = vunpack.c.h.bf16 %v241
        %v320 = vunpack.c.l.bf16 %v242
        %v321 = vunpack.c.h.bf16 %v242
        %v322 = vunpack.c.l.bf16 %v243
        %v323 = vunpack.c.h.bf16 %v243
        %v324 = vunpack.c.l.bf16 %v244
        %v325 = vunpack.c.h.bf16 %v244
        %v326 = vunpack.c.l.bf16 %v245
        %v327 = vunpack.c.h.bf16 %v245
        %v328 = vunpack.c.l.bf16 %v246
        %v329 = vunpack.c.h.bf16 %v246
        %v330 = vunpack.c.l.bf16 %v247
        %v331 = vunpack.c.h.bf16 %v247
        %v332 = vunpack.c.l.bf16 %v248
        %v333 = vunpack.c.h.bf16 %v248
        %v334 = vunpack.c.l.bf16 %v249
        %v335 = vunpack.c.h.bf16 %v249
        %v336 = vunpack.c.l.bf16 %v250
        %v337 = vunpack.c.h.bf16 %v250
        %v338 = vunpack.c.l.bf16 %v251
        %v339 = vunpack.c.h.bf16 %v251
        %v340 = vunpack.c.l.bf16 %v252
        %v341 = vunpack.c.h.bf16 %v252
        %v342 = vunpack.c.l.bf16 %v253
        %v343 = vunpack.c.h.bf16 %v253
        %v344 = vunpack.c.l.bf16 %v254
        %v345 = vunpack.c.h.bf16 %v254
        %v346 = vunpack.c.l.bf16 %v255
        %v347 = vunpack.c.h.bf16 %v255
        %v348 = vunpack.c.l.bf16 %v256
        %v349 = vunpack.c.h.bf16 %v256
        %v350 = vunpack.c.l.bf16 %v257
        %v351 = vunpack.c.h.bf16 %v257
        %v352 = vunpack.c.l.bf16 %v258
        %v353 = vunpack.c.h.bf16 %v258
        %v354 = vunpack.c.l.bf16 %v259
        %v355 = vunpack.c.h.bf16 %v259
        %v356 = vunpack.c.l.bf16 %v260
        %v357 = vunpack.c.h.bf16 %v260
        %v358 = vunpack.c.l.bf16 %v261
        %v359 = vunpack.c.h.bf16 %v261
        %v360 = vunpack.c.l.bf16 %v262
        %v361 = vunpack.c.h.bf16 %v262
        %v362 = vunpack.c.l.bf16 %v263
        %v363 = vunpack.c.h.bf16 %v263
        %v364 = vunpack.c.l.bf16 %v264
        %v365 = vunpack.c.h.bf16 %v264
        %v366 = vunpack.c.l.bf16 %v265
        %v367 = vunpack.c.h.bf16 %v265
        %v368 = vunpack.c.l.bf16 %v266
        %v369 = vunpack.c.h.bf16 %v266
        %v370 = vunpack.c.l.bf16 %v267
        %v371 = vunpack.c.h.bf16 %v267
        %v372 = vunpack.c.l.bf16 %v268
        %v373 = vunpack.c.h.bf16 %v268
        %v374 = vunpack.c.l.bf16 %v269
        %v375 = vunpack.c.h.bf16 %v269
        %v376 = vunpack.c.l.bf16 %v270
        %v377 = vunpack.c.h.bf16 %v270
        %v378 = vunpack.c.l.bf16 %v271
        %v379 = vunpack.c.h.bf16 %v271
        %v380 = vunpack.c.l.bf16 %v272
        %v381 = vunpack.c.h.bf16 %v272
        %v382 = vunpack.c.l.bf16 %v273
        %v383 = vunpack.c.h.bf16 %v273
        %v384 = vunpack.c.l.bf16 %v274
        %v385 = vunpack.c.h.bf16 %v274
        %v386 = vunpack.c.l.bf16 %v275
        %v387 = vunpack.c.h.bf16 %v275
        %v388 = vunpack.c.l.bf16 %v276
        %v389 = vunpack.c.h.bf16 %v276
        %v390 = vunpack.c.l.bf16 %v277
        %v391 = vunpack.c.h.bf16 %v277
        %v392 = vunpack.c.l.bf16 %v278
        %v393 = vunpack.c.h.bf16 %v278
        %v394 = vunpack.c.l.bf16 %v279
        %v395 = vunpack.c.h.bf16 %v279
        %v396 = vunpack.c.l.bf16 %v280
        %v397 = vunpack.c.h.bf16 %v280
        %v398 = vunpack.c.l.bf16 %v281
        %v399 = vunpack.c.h.bf16 %v281
        %v400 = vunpack.c.l.bf16 %v282
        %v401 = vunpack.c.h.bf16 %v282
        %v402 = vunpack.c.l.bf16 %v283
        %v403 = vunpack.c.h.bf16 %v283
        %v404 = vunpack.c.l.bf16 %v284
        %v405 = vunpack.c.h.bf16 %v284
        %v406 = vunpack.c.l.bf16 %v285
        %v407 = vunpack.c.h.bf16 %v285
        %v408 = vunpack.c.l.bf16 %v286
        %v409 = vunpack.c.h.bf16 %v286
        %v410 = vunpack.c.l.bf16 %v287
        %v411 = vunpack.c.h.bf16 %v287
        %v412 = vunpack.c.l.bf16 %v288
        %v413 = vunpack.c.h.bf16 %v288
        %v414 = vunpack.c.l.bf16 %v289
        %v415 = vunpack.c.h.bf16 %v289
        %v416 = vunpack.c.l.bf16 %v290
        %v417 = vunpack.c.h.bf16 %v290
        %v418 = vunpack.c.l.bf16 %v291
        %v419 = vunpack.c.h.bf16 %v291
        %v420 = vld [vmem:[%s1] sm:$0x77]
        %v421 = vld [vmem:[%s1 + $0x8] sm:$0x77]
        %v422 = vld [vmem:[%s1 + $0x10] sm:$0x77]
        %v423 = vld [vmem:[%s1 + $0x18] sm:$0x77]
        %v424 = vld [vmem:[%s2] sm:$0x1]
        %v426 = vlaneseq
        %v427 = vshrl.u32 %v426, 7
        %v428 = vsub.s32 0, %v427
        %v429 = vrot.slane %v424, %v428
        %v435 = vcombine.high %v420, %v420
        %v436 = vcombine.high %v421, %v421
        %v437 = vcombine.high %v422, %v422
        %v438 = vcombine.high %v423, %v423
        %vm442 = vcmask 31744
        %v444 = vsel %vm442, %v299, 0
        %v447 = vsel %vm442, %v307, 0
        %v450 = vsel %vm442, %v315, 0
        %v453 = vsel %vm442, %v323, 0
        %v456 = vsel %vm442, %v331, 0
        %v459 = vsel %vm442, %v339, 0
        %v462 = vsel %vm442, %v347, 0
        %v465 = vsel %vm442, %v355, 0
        %v468 = vsel %vm442, %v363, 0
        %v471 = vsel %vm442, %v371, 0
        %v474 = vsel %vm442, %v379, 0
        %v477 = vsel %vm442, %v387, 0
        %v480 = vsel %vm442, %v395, 0
        %v483 = vsel %vm442, %v403, 0
        %v486 = vsel %vm442, %v411, 0
        %v489 = vsel %vm442, %v419, 0
        %v491 = vsel %vm442, %v438, 0
        %493 = vmatprep.subr.mxu0 0.0
        %494 = vmatpush1.xpose.msra.mxu0 0.0
        %495 = vmatprep.subr.mxu0 0.0
        %496 = vmatpush1.xpose.msra.mxu0 0.0
        %497 = vmatprep.subr.mxu0 0.0
        %498 = vmatpush1.xpose.msra.mxu0 0.0
        %499 = vmatprep.subr.mxu0 0.0
        %500 = vmatpush1.xpose.msra.mxu0 0.0
        %501 = vmatprep.subr.mxu0 0.0
        %502 = vmatpush1.xpose.msra.mxu0 0.0
        %503 = vmatprep.subr.mxu0 0.0
        %504 = vmatpush1.xpose.msra.mxu0 0.0
        %505 = vmatprep.subr.mxu0 0.0
        %506 = vmatpush1.xpose.msra.mxu0 0.0
        %507 = vmatprep.subr.mxu0 0.0
        %508 = vmatpush1.xpose.msra.mxu0 0.0
        %509 = vmatprep.subr.mxu0 0.0
        %510 = vmatpush1.xpose.msra.mxu0 0.0
        %511 = vmatprep.subr.mxu0 0.0
        %512 = vmatpush1.xpose.msra.mxu0 0.0
        %513 = vmatprep.subr.mxu0 0.0
        %514 = vmatpush1.xpose.msra.mxu0 0.0
        %515 = vmatprep.subr.mxu0 0.0
        %516 = vmatpush1.xpose.msra.mxu0 0.0
        %517 = vmatprep.subr.mxu0 0.0
        %518 = vmatpush1.xpose.msra.mxu0 0.0
        %519 = vmatprep.subr.mxu0 0.0
        %520 = vmatpush1.xpose.msra.mxu0 0.0
        %521 = vmatprep.subr.mxu0 0.0
        %522 = vmatpush1.xpose.msra.mxu0 0.0
        %523 = vmatprep.subr.mxu0 %v435
        %524 = vmatpush1.xpose.msra.mxu0 %v420
        %525 = vmatprep.subr.mxu0 0.0
        %526 = vmatpush2.xpose.msra.mxu0 0.0
        %527 = vmatprep.subr.mxu0 0.0
        %528 = vmatpush2.xpose.msra.mxu0 0.0
        %529 = vmatprep.subr.mxu0 0.0
        %530 = vmatpush2.xpose.msra.mxu0 0.0
        %531 = vmatprep.subr.mxu0 0.0
        %532 = vmatpush2.xpose.msra.mxu0 0.0
        %533 = vmatprep.subr.mxu0 0.0
        %534 = vmatpush2.xpose.msra.mxu0 0.0
        %535 = vmatprep.subr.mxu0 0.0
        %536 = vmatpush2.xpose.msra.mxu0 0.0
        %537 = vmatprep.subr.mxu0 0.0
        %538 = vmatpush2.xpose.msra.mxu0 0.0
        %539 = vmatprep.subr.mxu0 0.0
        %540 = vmatpush2.xpose.msra.mxu0 0.0
        %541 = vmatprep.subr.mxu0 0.0
        %542 = vmatpush2.xpose.msra.mxu0 0.0
        %543 = vmatprep.subr.mxu0 0.0
        %544 = vmatpush2.xpose.msra.mxu0 0.0
        %545 = vmatprep.subr.mxu0 0.0
        %546 = vmatpush2.xpose.msra.mxu0 0.0
        %547 = vmatprep.subr.mxu0 0.0
        %548 = vmatpush2.xpose.msra.mxu0 0.0
        %549 = vmatprep.subr.mxu0 0.0
        %550 = vmatpush2.xpose.msra.mxu0 0.0
        %551 = vmatprep.subr.mxu0 0.0
        %552 = vmatpush2.xpose.msra.mxu0 0.0
        %553 = vmatprep.subr.mxu0 0.0
        %554 = vmatpush2.xpose.msra.mxu0 0.0
        %555 = vmatprep.subr.mxu0 0.0
        %556 = vmatpush2.xpose.msra.mxu0 0.0
        %557 = vmatprep.mubr.f32.mxu0 %v293
        %558 = vmatmul.mubr.f32.gmra.mxu0 %v292
        %v559 = vpop.f32.mrf.mxu0
        %v560 = vadd.f32 %v429, %v559
        %v561 = vpop.f32.mrf.mxu0
        %562 = vmatprep.mubr.f32.mxu0 %v301
        %563 = vmatmul.mubr.f32.gmra.mxu0 %v300
        %v564 = vpop.f32.mrf.mxu0
        %v565 = vadd.f32 %v429, %v564
        %v566 = vpop.f32.mrf.mxu0
        %567 = vmatprep.mubr.f32.mxu0 %v309
        %568 = vmatmul.mubr.f32.gmra.mxu0 %v308
        %v569 = vpop.f32.mrf.mxu0
        %v570 = vadd.f32 %v429, %v569
        %v571 = vpop.f32.mrf.mxu0
        %572 = vmatprep.mubr.f32.mxu0 %v317
        %573 = vmatmul.mubr.f32.gmra.mxu0 %v316
        %v574 = vpop.f32.mrf.mxu0
        %v575 = vadd.f32 %v429, %v574
        %v576 = vpop.f32.mrf.mxu0
        %577 = vmatprep.mubr.f32.mxu0 %v325
        %578 = vmatmul.mubr.f32.gmra.mxu0 %v324
        %v579 = vpop.f32.mrf.mxu0
        %v580 = vadd.f32 %v429, %v579
        %v581 = vpop.f32.mrf.mxu0
        %582 = vmatprep.mubr.f32.mxu0 %v333
        %583 = vmatmul.mubr.f32.gmra.mxu0 %v332
        %v584 = vpop.f32.mrf.mxu0
        %v585 = vadd.f32 %v429, %v584
        %v586 = vpop.f32.mrf.mxu0
        %587 = vmatprep.mubr.f32.mxu0 %v341
        %588 = vmatmul.mubr.f32.gmra.mxu0 %v340
        %v589 = vpop.f32.mrf.mxu0
        %v590 = vadd.f32 %v429, %v589
        %v591 = vpop.f32.mrf.mxu0
        %592 = vmatprep.mubr.f32.mxu0 %v349
        %593 = vmatmul.mubr.f32.gmra.mxu0 %v348
        %v594 = vpop.f32.mrf.mxu0
        %v595 = vadd.f32 %v429, %v594
        %v596 = vpop.f32.mrf.mxu0
        %597 = vmatprep.mubr.f32.mxu0 %v357
        %598 = vmatmul.mubr.f32.gmra.mxu0 %v356
        %v599 = vpop.f32.mrf.mxu0
        %v600 = vadd.f32 %v429, %v599
        %v601 = vpop.f32.mrf.mxu0
        %602 = vmatprep.mubr.f32.mxu0 %v365
        %603 = vmatmul.mubr.f32.gmra.mxu0 %v364
        %v604 = vpop.f32.mrf.mxu0
        %v605 = vadd.f32 %v429, %v604
        %v606 = vpop.f32.mrf.mxu0
        %607 = vmatprep.mubr.f32.mxu0 %v373
        %608 = vmatmul.mubr.f32.gmra.mxu0 %v372
        %v609 = vpop.f32.mrf.mxu0
        %v610 = vadd.f32 %v429, %v609
        %v611 = vpop.f32.mrf.mxu0
        %612 = vmatprep.mubr.f32.mxu0 %v381
        %613 = vmatmul.mubr.f32.gmra.mxu0 %v380
        %v614 = vpop.f32.mrf.mxu0
        %v615 = vadd.f32 %v429, %v614
        %v616 = vpop.f32.mrf.mxu0
        %617 = vmatprep.mubr.f32.mxu0 %v389
        %618 = vmatmul.mubr.f32.gmra.mxu0 %v388
        %v619 = vpop.f32.mrf.mxu0
        %v620 = vadd.f32 %v429, %v619
        %v621 = vpop.f32.mrf.mxu0
        %622 = vmatprep.mubr.f32.mxu0 %v397
        %623 = vmatmul.mubr.f32.gmra.mxu0 %v396
        %v624 = vpop.f32.mrf.mxu0
        %v625 = vadd.f32 %v429, %v624
        %v626 = vpop.f32.mrf.mxu0
        %627 = vmatprep.mubr.f32.mxu0 %v405
        %628 = vmatmul.mubr.f32.gmra.mxu0 %v404
        %v629 = vpop.f32.mrf.mxu0
        %v630 = vadd.f32 %v429, %v629
        %v631 = vpop.f32.mrf.mxu0
        %632 = vmatprep.mubr.f32.mxu0 %v413
        %633 = vmatmul.mubr.f32.gmra.mxu0 %v412
        %v634 = vpop.f32.mrf.mxu0
        %v635 = vadd.f32 %v429, %v634
        %v636 = vpop.f32.mrf.mxu0
        %637 = vdwg.mxu0
        %638 = vmatprep.subr.mxu0 0.0
        %639 = vmatpush1.xpose.msra.mxu0 0.0
        %640 = vmatprep.subr.mxu0 0.0
        %641 = vmatpush1.xpose.msra.mxu0 0.0
        %642 = vmatprep.subr.mxu0 0.0
        %643 = vmatpush1.xpose.msra.mxu0 0.0
        %644 = vmatprep.subr.mxu0 0.0
        %645 = vmatpush1.xpose.msra.mxu0 0.0
        %646 = vmatprep.subr.mxu0 0.0
        %647 = vmatpush1.xpose.msra.mxu0 0.0
        %648 = vmatprep.subr.mxu0 0.0
        %649 = vmatpush1.xpose.msra.mxu0 0.0
        %650 = vmatprep.subr.mxu0 0.0
        %651 = vmatpush1.xpose.msra.mxu0 0.0
        %652 = vmatprep.subr.mxu0 0.0
        %653 = vmatpush1.xpose.msra.mxu0 0.0
        %654 = vmatprep.subr.mxu0 0.0
        %655 = vmatpush1.xpose.msra.mxu0 0.0
        %656 = vmatprep.subr.mxu0 0.0
        %657 = vmatpush1.xpose.msra.mxu0 0.0
        %658 = vmatprep.subr.mxu0 0.0
        %659 = vmatpush1.xpose.msra.mxu0 0.0
        %660 = vmatprep.subr.mxu0 0.0
        %661 = vmatpush1.xpose.msra.mxu0 0.0
        %662 = vmatprep.subr.mxu0 0.0
        %663 = vmatpush1.xpose.msra.mxu0 0.0
        %664 = vmatprep.subr.mxu0 0.0
        %665 = vmatpush1.xpose.msra.mxu0 0.0
        %666 = vmatprep.subr.mxu0 0.0
        %667 = vmatpush1.xpose.msra.mxu0 0.0
        %668 = vmatprep.subr.mxu0 %v436
        %669 = vmatpush1.xpose.msra.mxu0 %v421
        %670 = vmatprep.subr.mxu0 0.0
        %671 = vmatpush2.xpose.msra.mxu0 0.0
        %672 = vmatprep.subr.mxu0 0.0
        %673 = vmatpush2.xpose.msra.mxu0 0.0
        %674 = vmatprep.subr.mxu0 0.0
        %675 = vmatpush2.xpose.msra.mxu0 0.0
        %676 = vmatprep.subr.mxu0 0.0
        %677 = vmatpush2.xpose.msra.mxu0 0.0
        %678 = vmatprep.subr.mxu0 0.0
        %679 = vmatpush2.xpose.msra.mxu0 0.0
        %680 = vmatprep.subr.mxu0 0.0
        %681 = vmatpush2.xpose.msra.mxu0 0.0
        %682 = vmatprep.subr.mxu0 0.0
        %683 = vmatpush2.xpose.msra.mxu0 0.0
        %684 = vmatprep.subr.mxu0 0.0
        %685 = vmatpush2.xpose.msra.mxu0 0.0
        %686 = vmatprep.subr.mxu0 0.0
        %687 = vmatpush2.xpose.msra.mxu0 0.0
        %688 = vmatprep.subr.mxu0 0.0
        %689 = vmatpush2.xpose.msra.mxu0 0.0
        %690 = vmatprep.subr.mxu0 0.0
        %691 = vmatpush2.xpose.msra.mxu0 0.0
        %692 = vmatprep.subr.mxu0 0.0
        %693 = vmatpush2.xpose.msra.mxu0 0.0
        %694 = vmatprep.subr.mxu0 0.0
        %695 = vmatpush2.xpose.msra.mxu0 0.0
        %696 = vmatprep.subr.mxu0 0.0
        %697 = vmatpush2.xpose.msra.mxu0 0.0
        %698 = vmatprep.subr.mxu0 0.0
        %699 = vmatpush2.xpose.msra.mxu0 0.0
        %700 = vmatprep.subr.mxu0 0.0
        %701 = vmatpush2.xpose.msra.mxu0 0.0
        %702 = vmatprep.mubr.f32.mxu0 %v295
        %703 = vmatmul.mubr.f32.gmra.mxu0 %v294
        %v704 = vpop.f32.mrf.mxu0
        %v705 = vadd.f32 %v560, %v704
        %v706 = vpop.f32.mrf.mxu0
        %707 = vmatprep.mubr.f32.mxu0 %v303
        %708 = vmatmul.mubr.f32.gmra.mxu0 %v302
        %v709 = vpop.f32.mrf.mxu0
        %v710 = vadd.f32 %v565, %v709
        %v711 = vpop.f32.mrf.mxu0
        %712 = vmatprep.mubr.f32.mxu0 %v311
        %713 = vmatmul.mubr.f32.gmra.mxu0 %v310
        %v714 = vpop.f32.mrf.mxu0
        %v715 = vadd.f32 %v570, %v714
        %v716 = vpop.f32.mrf.mxu0
        %717 = vmatprep.mubr.f32.mxu0 %v319
        %718 = vmatmul.mubr.f32.gmra.mxu0 %v318
        %v719 = vpop.f32.mrf.mxu0
        %v720 = vadd.f32 %v575, %v719
        %v721 = vpop.f32.mrf.mxu0
        %722 = vmatprep.mubr.f32.mxu0 %v327
        %723 = vmatmul.mubr.f32.gmra.mxu0 %v326
        %v724 = vpop.f32.mrf.mxu0
        %v725 = vadd.f32 %v580, %v724
        %v726 = vpop.f32.mrf.mxu0
        %727 = vmatprep.mubr.f32.mxu0 %v335
        %728 = vmatmul.mubr.f32.gmra.mxu0 %v334
        %v729 = vpop.f32.mrf.mxu0
        %v730 = vadd.f32 %v585, %v729
        %v731 = vpop.f32.mrf.mxu0
        %732 = vmatprep.mubr.f32.mxu0 %v343
        %733 = vmatmul.mubr.f32.gmra.mxu0 %v342
        %v734 = vpop.f32.mrf.mxu0
        %v735 = vadd.f32 %v590, %v734
        %v736 = vpop.f32.mrf.mxu0
        %737 = vmatprep.mubr.f32.mxu0 %v351
        %738 = vmatmul.mubr.f32.gmra.mxu0 %v350
        %v739 = vpop.f32.mrf.mxu0
        %v740 = vadd.f32 %v595, %v739
        %v741 = vpop.f32.mrf.mxu0
        %742 = vmatprep.mubr.f32.mxu0 %v359
        %743 = vmatmul.mubr.f32.gmra.mxu0 %v358
        %v744 = vpop.f32.mrf.mxu0
        %v745 = vadd.f32 %v600, %v744
        %v746 = vpop.f32.mrf.mxu0
        %747 = vmatprep.mubr.f32.mxu0 %v367
        %748 = vmatmul.mubr.f32.gmra.mxu0 %v366
        %v749 = vpop.f32.mrf.mxu0
        %v750 = vadd.f32 %v605, %v749
        %v751 = vpop.f32.mrf.mxu0
        %752 = vmatprep.mubr.f32.mxu0 %v375
        %753 = vmatmul.mubr.f32.gmra.mxu0 %v374
        %v754 = vpop.f32.mrf.mxu0
        %v755 = vadd.f32 %v610, %v754
        %v756 = vpop.f32.mrf.mxu0
        %757 = vmatprep.mubr.f32.mxu0 %v383
        %758 = vmatmul.mubr.f32.gmra.mxu0 %v382
        %v759 = vpop.f32.mrf.mxu0
        %v760 = vadd.f32 %v615, %v759
        %v761 = vpop.f32.mrf.mxu0
        %762 = vmatprep.mubr.f32.mxu0 %v391
        %763 = vmatmul.mubr.f32.gmra.mxu0 %v390
        %v764 = vpop.f32.mrf.mxu0
        %v765 = vadd.f32 %v620, %v764
        %v766 = vpop.f32.mrf.mxu0
        %767 = vmatprep.mubr.f32.mxu0 %v399
        %768 = vmatmul.mubr.f32.gmra.mxu0 %v398
        %v769 = vpop.f32.mrf.mxu0
        %v770 = vadd.f32 %v625, %v769
        %v771 = vpop.f32.mrf.mxu0
        %772 = vmatprep.mubr.f32.mxu0 %v407
        %773 = vmatmul.mubr.f32.gmra.mxu0 %v406
        %v774 = vpop.f32.mrf.mxu0
        %v775 = vadd.f32 %v630, %v774
        %v776 = vpop.f32.mrf.mxu0
        %777 = vmatprep.mubr.f32.mxu0 %v415
        %778 = vmatmul.mubr.f32.gmra.mxu0 %v414
        %v779 = vpop.f32.mrf.mxu0
        %v780 = vadd.f32 %v635, %v779
        %v781 = vpop.f32.mrf.mxu0
        %782 = vdwg.mxu0
        %783 = vmatprep.subr.mxu0 0.0
        %784 = vmatpush1.xpose.msra.mxu0 0.0
        %785 = vmatprep.subr.mxu0 0.0
        %786 = vmatpush1.xpose.msra.mxu0 0.0
        %787 = vmatprep.subr.mxu0 0.0
        %788 = vmatpush1.xpose.msra.mxu0 0.0
        %789 = vmatprep.subr.mxu0 0.0
        %790 = vmatpush1.xpose.msra.mxu0 0.0
        %791 = vmatprep.subr.mxu0 0.0
        %792 = vmatpush1.xpose.msra.mxu0 0.0
        %793 = vmatprep.subr.mxu0 0.0
        %794 = vmatpush1.xpose.msra.mxu0 0.0
        %795 = vmatprep.subr.mxu0 0.0
        %796 = vmatpush1.xpose.msra.mxu0 0.0
        %797 = vmatprep.subr.mxu0 0.0
        %798 = vmatpush1.xpose.msra.mxu0 0.0
        %799 = vmatprep.subr.mxu0 0.0
        %800 = vmatpush1.xpose.msra.mxu0 0.0
        %801 = vmatprep.subr.mxu0 0.0
        %802 = vmatpush1.xpose.msra.mxu0 0.0
        %803 = vmatprep.subr.mxu0 0.0
        %804 = vmatpush1.xpose.msra.mxu0 0.0
        %805 = vmatprep.subr.mxu0 0.0
        %806 = vmatpush1.xpose.msra.mxu0 0.0
        %807 = vmatprep.subr.mxu0 0.0
        %808 = vmatpush1.xpose.msra.mxu0 0.0
        %809 = vmatprep.subr.mxu0 0.0
        %810 = vmatpush1.xpose.msra.mxu0 0.0
        %811 = vmatprep.subr.mxu0 0.0
        %812 = vmatpush1.xpose.msra.mxu0 0.0
        %813 = vmatprep.subr.mxu0 %v437
        %814 = vmatpush1.xpose.msra.mxu0 %v422
        %815 = vmatprep.subr.mxu0 0.0
        %816 = vmatpush2.xpose.msra.mxu0 0.0
        %817 = vmatprep.subr.mxu0 0.0
        %818 = vmatpush2.xpose.msra.mxu0 0.0
        %819 = vmatprep.subr.mxu0 0.0
        %820 = vmatpush2.xpose.msra.mxu0 0.0
        %821 = vmatprep.subr.mxu0 0.0
        %822 = vmatpush2.xpose.msra.mxu0 0.0
        %823 = vmatprep.subr.mxu0 0.0
        %824 = vmatpush2.xpose.msra.mxu0 0.0
        %825 = vmatprep.subr.mxu0 0.0
        %826 = vmatpush2.xpose.msra.mxu0 0.0
        %827 = vmatprep.subr.mxu0 0.0
        %828 = vmatpush2.xpose.msra.mxu0 0.0
        %829 = vmatprep.subr.mxu0 0.0
        %830 = vmatpush2.xpose.msra.mxu0 0.0
        %831 = vmatprep.subr.mxu0 0.0
        %832 = vmatpush2.xpose.msra.mxu0 0.0
        %833 = vmatprep.subr.mxu0 0.0
        %834 = vmatpush2.xpose.msra.mxu0 0.0
        %835 = vmatprep.subr.mxu0 0.0
        %836 = vmatpush2.xpose.msra.mxu0 0.0
        %837 = vmatprep.subr.mxu0 0.0
        %838 = vmatpush2.xpose.msra.mxu0 0.0
        %839 = vmatprep.subr.mxu0 0.0
        %840 = vmatpush2.xpose.msra.mxu0 0.0
        %841 = vmatprep.subr.mxu0 0.0
        %842 = vmatpush2.xpose.msra.mxu0 0.0
        %843 = vmatprep.subr.mxu0 0.0
        %844 = vmatpush2.xpose.msra.mxu0 0.0
        %845 = vmatprep.subr.mxu0 0.0
        %846 = vmatpush2.xpose.msra.mxu0 0.0
        %847 = vmatprep.mubr.f32.mxu0 %v297
        %848 = vmatmul.mubr.f32.gmra.mxu0 %v296
        %v849 = vpop.f32.mrf.mxu0
        %v850 = vadd.f32 %v705, %v849
        %v851 = vpop.f32.mrf.mxu0
        %852 = vmatprep.mubr.f32.mxu0 %v305
        %853 = vmatmul.mubr.f32.gmra.mxu0 %v304
        %v854 = vpop.f32.mrf.mxu0
        %v855 = vadd.f32 %v710, %v854
        %v856 = vpop.f32.mrf.mxu0
        %857 = vmatprep.mubr.f32.mxu0 %v313
        %858 = vmatmul.mubr.f32.gmra.mxu0 %v312
        %v859 = vpop.f32.mrf.mxu0
        %v860 = vadd.f32 %v715, %v859
        %v861 = vpop.f32.mrf.mxu0
        %862 = vmatprep.mubr.f32.mxu0 %v321
        %863 = vmatmul.mubr.f32.gmra.mxu0 %v320
        %v864 = vpop.f32.mrf.mxu0
        %v865 = vadd.f32 %v720, %v864
        %v866 = vpop.f32.mrf.mxu0
        %867 = vmatprep.mubr.f32.mxu0 %v329
        %868 = vmatmul.mubr.f32.gmra.mxu0 %v328
        %v869 = vpop.f32.mrf.mxu0
        %v870 = vadd.f32 %v725, %v869
        %v871 = vpop.f32.mrf.mxu0
        %872 = vmatprep.mubr.f32.mxu0 %v337
        %873 = vmatmul.mubr.f32.gmra.mxu0 %v336
        %v874 = vpop.f32.mrf.mxu0
        %v875 = vadd.f32 %v730, %v874
        %v876 = vpop.f32.mrf.mxu0
        %877 = vmatprep.mubr.f32.mxu0 %v345
        %878 = vmatmul.mubr.f32.gmra.mxu0 %v344
        %v879 = vpop.f32.mrf.mxu0
        %v880 = vadd.f32 %v735, %v879
        %v881 = vpop.f32.mrf.mxu0
        %882 = vmatprep.mubr.f32.mxu0 %v353
        %883 = vmatmul.mubr.f32.gmra.mxu0 %v352
        %v884 = vpop.f32.mrf.mxu0
        %v885 = vadd.f32 %v740, %v884
        %v886 = vpop.f32.mrf.mxu0
        %887 = vmatprep.mubr.f32.mxu0 %v361
        %888 = vmatmul.mubr.f32.gmra.mxu0 %v360
        %v889 = vpop.f32.mrf.mxu0
        %v890 = vadd.f32 %v745, %v889
        %v891 = vpop.f32.mrf.mxu0
        %892 = vmatprep.mubr.f32.mxu0 %v369
        %893 = vmatmul.mubr.f32.gmra.mxu0 %v368
        %v894 = vpop.f32.mrf.mxu0
        %v895 = vadd.f32 %v750, %v894
        %v896 = vpop.f32.mrf.mxu0
        %897 = vmatprep.mubr.f32.mxu0 %v377
        %898 = vmatmul.mubr.f32.gmra.mxu0 %v376
        %v899 = vpop.f32.mrf.mxu0
        %v900 = vadd.f32 %v755, %v899
        %v901 = vpop.f32.mrf.mxu0
        %902 = vmatprep.mubr.f32.mxu0 %v385
        %903 = vmatmul.mubr.f32.gmra.mxu0 %v384
        %v904 = vpop.f32.mrf.mxu0
        %v905 = vadd.f32 %v760, %v904
        %v906 = vpop.f32.mrf.mxu0
        %907 = vmatprep.mubr.f32.mxu0 %v393
        %908 = vmatmul.mubr.f32.gmra.mxu0 %v392
        %v909 = vpop.f32.mrf.mxu0
        %v910 = vadd.f32 %v765, %v909
        %v911 = vpop.f32.mrf.mxu0
        %912 = vmatprep.mubr.f32.mxu0 %v401
        %913 = vmatmul.mubr.f32.gmra.mxu0 %v400
        %v914 = vpop.f32.mrf.mxu0
        %v915 = vadd.f32 %v770, %v914
        %v916 = vpop.f32.mrf.mxu0
        %917 = vmatprep.mubr.f32.mxu0 %v409
        %918 = vmatmul.mubr.f32.gmra.mxu0 %v408
        %v919 = vpop.f32.mrf.mxu0
        %v920 = vadd.f32 %v775, %v919
        %v921 = vpop.f32.mrf.mxu0
        %922 = vmatprep.mubr.f32.mxu0 %v417
        %923 = vmatmul.mubr.f32.gmra.mxu0 %v416
        %v924 = vpop.f32.mrf.mxu0
        %v925 = vadd.f32 %v780, %v924
        %v926 = vpop.f32.mrf.mxu0
        %927 = vdwg.mxu0
        %928 = vmatprep.subr.mxu0 0.0
        %929 = vmatpush1.xpose.msra.mxu0 0.0
        %930 = vmatprep.subr.mxu0 0.0
        %931 = vmatpush1.xpose.msra.mxu0 0.0
        %932 = vmatprep.subr.mxu0 0.0
        %933 = vmatpush1.xpose.msra.mxu0 0.0
        %934 = vmatprep.subr.mxu0 0.0
        %935 = vmatpush1.xpose.msra.mxu0 0.0
        %936 = vmatprep.subr.mxu0 0.0
        %937 = vmatpush1.xpose.msra.mxu0 0.0
        %938 = vmatprep.subr.mxu0 0.0
        %939 = vmatpush1.xpose.msra.mxu0 0.0
        %940 = vmatprep.subr.mxu0 0.0
        %941 = vmatpush1.xpose.msra.mxu0 0.0
        %942 = vmatprep.subr.mxu0 0.0
        %943 = vmatpush1.xpose.msra.mxu0 0.0
        %944 = vmatprep.subr.mxu0 0.0
        %945 = vmatpush1.xpose.msra.mxu0 0.0
        %946 = vmatprep.subr.mxu0 0.0
        %947 = vmatpush1.xpose.msra.mxu0 0.0
        %948 = vmatprep.subr.mxu0 0.0
        %949 = vmatpush1.xpose.msra.mxu0 0.0
        %950 = vmatprep.subr.mxu0 0.0
        %951 = vmatpush1.xpose.msra.mxu0 0.0
        %952 = vmatprep.subr.mxu0 0.0
        %953 = vmatpush1.xpose.msra.mxu0 0.0
        %954 = vmatprep.subr.mxu0 0.0
        %955 = vmatpush1.xpose.msra.mxu0 0.0
        %956 = vmatprep.subr.mxu0 0.0
        %957 = vmatpush1.xpose.msra.mxu0 0.0
        %958 = vmatprep.subr.mxu0 %v491
        %959 = vmatpush1.xpose.msra.mxu0 %v423
        %960 = vmatprep.subr.mxu0 0.0
        %961 = vmatpush2.xpose.msra.mxu0 0.0
        %962 = vmatprep.subr.mxu0 0.0
        %963 = vmatpush2.xpose.msra.mxu0 0.0
        %964 = vmatprep.subr.mxu0 0.0
        %965 = vmatpush2.xpose.msra.mxu0 0.0
        %966 = vmatprep.subr.mxu0 0.0
        %967 = vmatpush2.xpose.msra.mxu0 0.0
        %968 = vmatprep.subr.mxu0 0.0
        %969 = vmatpush2.xpose.msra.mxu0 0.0
        %970 = vmatprep.subr.mxu0 0.0
        %971 = vmatpush2.xpose.msra.mxu0 0.0
        %972 = vmatprep.subr.mxu0 0.0
        %973 = vmatpush2.xpose.msra.mxu0 0.0
        %974 = vmatprep.subr.mxu0 0.0
        %975 = vmatpush2.xpose.msra.mxu0 0.0
        %976 = vmatprep.subr.mxu0 0.0
        %977 = vmatpush2.xpose.msra.mxu0 0.0
        %978 = vmatprep.subr.mxu0 0.0
        %979 = vmatpush2.xpose.msra.mxu0 0.0
        %980 = vmatprep.subr.mxu0 0.0
        %981 = vmatpush2.xpose.msra.mxu0 0.0
        %982 = vmatprep.subr.mxu0 0.0
        %983 = vmatpush2.xpose.msra.mxu0 0.0
        %984 = vmatprep.subr.mxu0 0.0
        %985 = vmatpush2.xpose.msra.mxu0 0.0
        %986 = vmatprep.subr.mxu0 0.0
        %987 = vmatpush2.xpose.msra.mxu0 0.0
        %988 = vmatprep.subr.mxu0 0.0
        %989 = vmatpush2.xpose.msra.mxu0 0.0
        %990 = vmatprep.subr.mxu0 0.0
        %991 = vmatpush2.xpose.msra.mxu0 0.0
        %992 = vmatprep.mubr.f32.mxu0 %v444
        %993 = vmatmul.mubr.f32.gmra.mxu0 %v298
        %v994 = vpop.f32.mrf.mxu0
        %v995 = vadd.f32 %v850, %v994
        %v996 = vpop.f32.mrf.mxu0
        %997 = vmatprep.mubr.f32.mxu0 %v447
        %998 = vmatmul.mubr.f32.gmra.mxu0 %v306
        %v999 = vpop.f32.mrf.mxu0
        %v1000 = vadd.f32 %v855, %v999
        %v1001 = vpop.f32.mrf.mxu0
        %1002 = vmatprep.mubr.f32.mxu0 %v450
        %1003 = vmatmul.mubr.f32.gmra.mxu0 %v314
        %v1004 = vpop.f32.mrf.mxu0
        %v1005 = vadd.f32 %v860, %v1004
        %v1006 = vpop.f32.mrf.mxu0
        %1007 = vmatprep.mubr.f32.mxu0 %v453
        %1008 = vmatmul.mubr.f32.gmra.mxu0 %v322
        %v1009 = vpop.f32.mrf.mxu0
        %v1010 = vadd.f32 %v865, %v1009
        %v1011 = vpop.f32.mrf.mxu0
        %1012 = vmatprep.mubr.f32.mxu0 %v456
        %1013 = vmatmul.mubr.f32.gmra.mxu0 %v330
        %v1014 = vpop.f32.mrf.mxu0
        %v1015 = vadd.f32 %v870, %v1014
        %v1016 = vpop.f32.mrf.mxu0
        %1017 = vmatprep.mubr.f32.mxu0 %v459
        %1018 = vmatmul.mubr.f32.gmra.mxu0 %v338
        %v1019 = vpop.f32.mrf.mxu0
        %v1020 = vadd.f32 %v875, %v1019
        %v1021 = vpop.f32.mrf.mxu0
        %1022 = vmatprep.mubr.f32.mxu0 %v462
        %1023 = vmatmul.mubr.f32.gmra.mxu0 %v346
        %v1024 = vpop.f32.mrf.mxu0
        %v1025 = vadd.f32 %v880, %v1024
        %v1026 = vpop.f32.mrf.mxu0
        %1027 = vmatprep.mubr.f32.mxu0 %v465
        %1028 = vmatmul.mubr.f32.gmra.mxu0 %v354
        %v1029 = vpop.f32.mrf.mxu0
        %v1030 = vadd.f32 %v885, %v1029
        %v1031 = vpop.f32.mrf.mxu0
        %1032 = vmatprep.mubr.f32.mxu0 %v468
        %1033 = vmatmul.mubr.f32.gmra.mxu0 %v362
        %v1034 = vpop.f32.mrf.mxu0
        %v1035 = vadd.f32 %v890, %v1034
        %v1036 = vpop.f32.mrf.mxu0
        %1037 = vmatprep.mubr.f32.mxu0 %v471
        %1038 = vmatmul.mubr.f32.gmra.mxu0 %v370
        %v1039 = vpop.f32.mrf.mxu0
        %v1040 = vadd.f32 %v895, %v1039
        %v1041 = vpop.f32.mrf.mxu0
        %1042 = vmatprep.mubr.f32.mxu0 %v474
        %1043 = vmatmul.mubr.f32.gmra.mxu0 %v378
        %v1044 = vpop.f32.mrf.mxu0
        %v1045 = vadd.f32 %v900, %v1044
        %v1046 = vpop.f32.mrf.mxu0
        %1047 = vmatprep.mubr.f32.mxu0 %v477
        %1048 = vmatmul.mubr.f32.gmra.mxu0 %v386
        %v1049 = vpop.f32.mrf.mxu0
        %v1050 = vadd.f32 %v905, %v1049
        %v1051 = vpop.f32.mrf.mxu0
        %1052 = vmatprep.mubr.f32.mxu0 %v480
        %1053 = vmatmul.mubr.f32.gmra.mxu0 %v394
        %v1054 = vpop.f32.mrf.mxu0
        %v1055 = vadd.f32 %v910, %v1054
        %v1056 = vpop.f32.mrf.mxu0
        %1057 = vmatprep.mubr.f32.mxu0 %v483
        %1058 = vmatmul.mubr.f32.gmra.mxu0 %v402
        %v1059 = vpop.f32.mrf.mxu0
        %v1060 = vadd.f32 %v915, %v1059
        %v1061 = vpop.f32.mrf.mxu0
        %1062 = vmatprep.mubr.f32.mxu0 %v486
        %1063 = vmatmul.mubr.f32.gmra.mxu0 %v410
        %v1064 = vpop.f32.mrf.mxu0
        %v1065 = vadd.f32 %v920, %v1064
        %v1066 = vpop.f32.mrf.mxu0
        %1067 = vmatprep.mubr.f32.mxu0 %v489
        %1068 = vmatmul.mubr.f32.gmra.mxu0 %v418
        %v1069 = vpop.f32.mrf.mxu0
        %v1070 = vadd.f32 %v925, %v1069
        %v1071 = vpop.f32.mrf.mxu0
        %1072 = vdwg.mxu0
        %v1073 = vxor.u32 %v995, 2147483648
        %v1074 = vxor.u32 %v1000, 2147483648
        %v1075 = vxor.u32 %v1005, 2147483648
        %v1076 = vxor.u32 %v1010, 2147483648
        %v1077 = vxor.u32 %v1015, 2147483648
        %v1078 = vxor.u32 %v1020, 2147483648
        %v1079 = vxor.u32 %v1025, 2147483648
        %v1080 = vxor.u32 %v1030, 2147483648
        %v1081 = vxor.u32 %v1035, 2147483648
        %v1082 = vxor.u32 %v1040, 2147483648
        %v1083 = vxor.u32 %v1045, 2147483648
        %v1084 = vxor.u32 %v1050, 2147483648
        %v1085 = vxor.u32 %v1055, 2147483648
        %v1086 = vxor.u32 %v1060, 2147483648
        %v1087 = vxor.u32 %v1065, 2147483648
        %v1088 = vxor.u32 %v1070, 2147483648
        %v1089 = vmul.f32 %v1073, 1.442695
        %v1090 = vpow.pop %v1089
        %v1091 = vmul.f32 %v1074, 1.442695
        %v1092 = vpow.pop %v1091
        %v1093 = vmul.f32 %v1075, 1.442695
        %v1094 = vpow.pop %v1093
        %v1095 = vmul.f32 %v1076, 1.442695
        %v1096 = vpow.pop %v1095
        %v1097 = vmul.f32 %v1077, 1.442695
        %v1098 = vpow.pop %v1097
        %v1099 = vmul.f32 %v1078, 1.442695
        %v1100 = vpow.pop %v1099
        %v1101 = vmul.f32 %v1079, 1.442695
        %v1102 = vpow.pop %v1101
        %v1103 = vmul.f32 %v1080, 1.442695
        %v1104 = vpow.pop %v1103
        %v1105 = vmul.f32 %v1081, 1.442695
        %v1106 = vpow.pop %v1105
        %v1107 = vmul.f32 %v1082, 1.442695
        %v1108 = vpow.pop %v1107
        %v1109 = vmul.f32 %v1083, 1.442695
        %v1110 = vpow.pop %v1109
        %v1111 = vmul.f32 %v1084, 1.442695
        %v1112 = vpow.pop %v1111
        %v1113 = vmul.f32 %v1085, 1.442695
        %v1114 = vpow.pop %v1113
        %v1115 = vmul.f32 %v1086, 1.442695
        %v1116 = vpow.pop %v1115
        %v1117 = vmul.f32 %v1087, 1.442695
        %v1118 = vpow.pop %v1117
        %v1119 = vmul.f32 %v1088, 1.442695
        %v1120 = vpow.pop %v1119
        %v1121 = vadd.f32 %v1090, 1.0
        %v1122 = vadd.f32 %v1092, 1.0
        %v1123 = vadd.f32 %v1094, 1.0
        %v1124 = vadd.f32 %v1096, 1.0
        %v1125 = vadd.f32 %v1098, 1.0
        %v1126 = vadd.f32 %v1100, 1.0
        %v1127 = vadd.f32 %v1102, 1.0
        %v1128 = vadd.f32 %v1104, 1.0
        %v1129 = vadd.f32 %v1106, 1.0
        %v1130 = vadd.f32 %v1108, 1.0
        %v1131 = vadd.f32 %v1110, 1.0
        %v1132 = vadd.f32 %v1112, 1.0
        %v1133 = vadd.f32 %v1114, 1.0
        %v1134 = vadd.f32 %v1116, 1.0
        %v1135 = vadd.f32 %v1118, 1.0
        %v1136 = vadd.f32 %v1120, 1.0
        %v1137 = vrcp.pop %v1121
        %v1138 = vmul.f32 1.0, %v1137
        %v1139 = vrcp.pop %v1122
        %v1140 = vmul.f32 1.0, %v1139
        %v1141 = vrcp.pop %v1123
        %v1142 = vmul.f32 1.0, %v1141
        %v1143 = vrcp.pop %v1124
        %v1144 = vmul.f32 1.0, %v1143
        %v1145 = vrcp.pop %v1125
        %v1146 = vmul.f32 1.0, %v1145
        %v1147 = vrcp.pop %v1126
        %v1148 = vmul.f32 1.0, %v1147
        %v1149 = vrcp.pop %v1127
        %v1150 = vmul.f32 1.0, %v1149
        %v1151 = vrcp.pop %v1128
        %v1152 = vmul.f32 1.0, %v1151
        %v1153 = vrcp.pop %v1129
        %v1154 = vmul.f32 1.0, %v1153
        %v1155 = vrcp.pop %v1130
        %v1156 = vmul.f32 1.0, %v1155
        %v1157 = vrcp.pop %v1131
        %v1158 = vmul.f32 1.0, %v1157
        %v1159 = vrcp.pop %v1132
        %v1160 = vmul.f32 1.0, %v1159
        %v1161 = vrcp.pop %v1133
        %v1162 = vmul.f32 1.0, %v1161
        %v1163 = vrcp.pop %v1134
        %v1164 = vmul.f32 1.0, %v1163
        %v1165 = vrcp.pop %v1135
        %v1166 = vmul.f32 1.0, %v1165
        %v1167 = vrcp.pop %v1136
        %v1168 = vmul.f32 1.0, %v1167
        %v1169 = vld [vmem:[%s3] sm:$0xff]
        %v1170 = vld [vmem:[%s4] sm:$0xff]
        %1172 = vset.pattern.permute.xlu0 0
        %1173 = vperm.xlu0 %1172, %v1170
        %v1174 = vpop.permute.xlu0 %1173
        %vm1176 = vcmask 23552
        %v1178 = vsel %vm1176, %v1169, 0
        %v1181 = vsel %vm1176, %v1138, 0
        %v1184 = vsel %vm1176, %v1140, 0
        %v1187 = vsel %vm1176, %v1142, 0
        %v1190 = vsel %vm1176, %v1144, 0
        %v1193 = vsel %vm1176, %v1146, 0
        %v1196 = vsel %vm1176, %v1148, 0
        %v1199 = vsel %vm1176, %v1150, 0
        %v1202 = vsel %vm1176, %v1152, 0
        %v1205 = vsel %vm1176, %v1154, 0
        %v1208 = vsel %vm1176, %v1156, 0
        %v1211 = vsel %vm1176, %v1158, 0
        %v1214 = vsel %vm1176, %v1160, 0
        %v1217 = vsel %vm1176, %v1162, 0
        %v1220 = vsel %vm1176, %v1164, 0
        %v1223 = vsel %vm1176, %v1166, 0
        %v1226 = vsel %vm1176, %v1168, 0
        %1228 = vmatprep.subr.mxu0 0.0
        %1229 = vmatpush1.xpose.msra.mxu0 %v1226
        %1230 = vmatprep.subr.mxu0 0.0
        %1231 = vmatpush1.xpose.msra.mxu0 %v1223
        %1232 = vmatprep.subr.mxu0 0.0
        %1233 = vmatpush1.xpose.msra.mxu0 %v1220
        %1234 = vmatprep.subr.mxu0 0.0
        %1235 = vmatpush1.xpose.msra.mxu0 %v1217
        %1236 = vmatprep.subr.mxu0 0.0
        %1237 = vmatpush1.xpose.msra.mxu0 %v1214
        %1238 = vmatprep.subr.mxu0 0.0
        %1239 = vmatpush1.xpose.msra.mxu0 %v1211
        %1240 = vmatprep.subr.mxu0 0.0
        %1241 = vmatpush1.xpose.msra.mxu0 %v1208
        %1242 = vmatprep.subr.mxu0 0.0
        %1243 = vmatpush1.xpose.msra.mxu0 %v1205
        %1244 = vmatprep.subr.mxu0 0.0
        %1245 = vmatpush1.xpose.msra.mxu0 %v1202
        %1246 = vmatprep.subr.mxu0 0.0
        %1247 = vmatpush1.xpose.msra.mxu0 %v1199
        %1248 = vmatprep.subr.mxu0 0.0
        %1249 = vmatpush1.xpose.msra.mxu0 %v1196
        %1250 = vmatprep.subr.mxu0 0.0
        %1251 = vmatpush1.xpose.msra.mxu0 %v1193
        %1252 = vmatprep.subr.mxu0 0.0
        %1253 = vmatpush1.xpose.msra.mxu0 %v1190
        %1254 = vmatprep.subr.mxu0 0.0
        %1255 = vmatpush1.xpose.msra.mxu0 %v1187
        %1256 = vmatprep.subr.mxu0 0.0
        %1257 = vmatpush1.xpose.msra.mxu0 %v1184
        %1258 = vmatprep.subr.mxu0 0.0
        %1259 = vmatpush1.xpose.msra.mxu0 %v1181
        %1260 = vmatprep.subr.mxu0 0.0
        %1261 = vmatpush2.xpose.msra.mxu0 0.0
        %1262 = vmatprep.subr.mxu0 0.0
        %1263 = vmatpush2.xpose.msra.mxu0 0.0
        %1264 = vmatprep.subr.mxu0 0.0
        %1265 = vmatpush2.xpose.msra.mxu0 0.0
        %1266 = vmatprep.subr.mxu0 0.0
        %1267 = vmatpush2.xpose.msra.mxu0 0.0
        %1268 = vmatprep.subr.mxu0 0.0
        %1269 = vmatpush2.xpose.msra.mxu0 0.0
        %1270 = vmatprep.subr.mxu0 0.0
        %1271 = vmatpush2.xpose.msra.mxu0 0.0
        %1272 = vmatprep.subr.mxu0 0.0
        %1273 = vmatpush2.xpose.msra.mxu0 0.0
        %1274 = vmatprep.subr.mxu0 0.0
        %1275 = vmatpush2.xpose.msra.mxu0 0.0
        %1276 = vmatprep.subr.mxu0 0.0
        %1277 = vmatpush2.xpose.msra.mxu0 0.0
        %1278 = vmatprep.subr.mxu0 0.0
        %1279 = vmatpush2.xpose.msra.mxu0 0.0
        %1280 = vmatprep.subr.mxu0 0.0
        %1281 = vmatpush2.xpose.msra.mxu0 0.0
        %1282 = vmatprep.subr.mxu0 0.0
        %1283 = vmatpush2.xpose.msra.mxu0 0.0
        %1284 = vmatprep.subr.mxu0 0.0
        %1285 = vmatpush2.xpose.msra.mxu0 0.0
        %1286 = vmatprep.subr.mxu0 0.0
        %1287 = vmatpush2.xpose.msra.mxu0 0.0
        %1288 = vmatprep.subr.mxu0 0.0
        %1289 = vmatpush2.xpose.msra.mxu0 0.0
        %1290 = vmatprep.subr.mxu0 0.0
        %1291 = vmatpush2.xpose.msra.mxu0 0.0
        %1292 = vmatprep.mubr.f32.mxu0 0.0
        %1293 = vmatmul.mubr.f32.gmra.mxu0 %v1178
        %v1294 = vpop.f32.mrf.mxu0
        %v1295 = vadd.f32 %v1174, %v1294
        %v1296 = vpop.f32.mrf.mxu0
        %1297 = vdwg.mxu0
        %v1298 = vxor.u32 %v1295, 2147483648
        %v1299 = vmul.f32 %v1298, 1.442695
        %v1300 = vpow.pop %v1299
        %v1301 = vadd.f32 %v1300, 1.0
        %v1302 = vrcp.pop %v1301
        %v1303 = vmul.f32 1.0, %v1302
        %1304 = vst [vmem:[%s220] sm:$0xff] %v1303
        %s1305 = sand.u32 %s137, 1
        %s1306 = scalar_lea.sflag [#allocation3], %s1305
        %s1307 = sand.u32 %s137, 1
        %s1308 = smul.addr %s1307, 8
        %s1309 = scalar_lea.vmem [#allocation2], %s1308
        // Predicated region
        $region41: #{tpu_custom_call.1} parent=39 // pred_check
          %p1310 = pneg %p147
        $region42: #{tpu_custom_call.1} parent=39 // pred_check_branch
          %1312 = sbr.rel (%p1310) target = $region44
        $region43: #{tpu_custom_call.1} parent=39 // pred_region
          %s1314 = ssub.s32 128, 128
          %1315 = vsyncadd %s1306, %s1314
          %s1316 = smul.addr %s19, 128
          %s1317 = scalar_lea.hbm %s5, %s1316
          %s1319 = sshll.u32 %s1309, 4
          %s1320 = int_to_ptr.vmem [resolvable:$true] %s1319
          %1322 = dma.vmem_to_hbm [thread:$0]  %s1320, 128, %s1317, %s1306
        $region44: #{tpu_custom_call.1} parent=39 // pred_fallthru
          _
      $region40: #{tpu_custom_call.1} parent=5 // pred_fallthru
        _
      %p1323 = scmp.le.s32.totalorder 2, %s14
      // Predicated region
      $region45: #{tpu_custom_call.1} parent=5 // pred_check
        %p1324 = pneg %p1323
      $region46: #{tpu_custom_call.1} parent=5 // pred_check_branch
        %1326 = sbr.rel (%p1324) target = $region48
      $region47: #{tpu_custom_call.1} parent=5 // pred_region
        %s1327 = ssub.s32 %s14, 2
        // Predicated region
        $region49: #{tpu_custom_call.1} parent=47 // pred_check
          %p1328 = pneg %p153
        $region50: #{tpu_custom_call.1} parent=47 // pred_check_branch
          %1330 = sbr.rel (%p1328) target = $region52
        $region51: #{tpu_custom_call.1} parent=47 // pred_region
          %s1331 = sand.u32 %s138, 1
          %s1332 = scalar_lea.sflag [#allocation3], %s1331
          %s1333 = sand.u32 %s138, 1
          %s1334 = smul.addr %s1333, 8
          %s1335 = scalar_lea.vmem [#allocation2], %s1334
          %1336 = dma.done %s1332, 128
        $region52: #{tpu_custom_call.1} parent=47 // pred_fallthru
          _
      $region48: #{tpu_custom_call.1} parent=5 // pred_fallthru
        _
    $region6: #{tpu_custom_call.1} parent=1 // loop_footer
      %s18 = sadd.s32 1, %s14
    $region7: #{tpu_custom_call.1} parent=1 // loop_footer_branch
      %13 = sbr.rel target = $region3
    $region8: #{tpu_custom_call.1} parent=1 // loop_exit
      _
    %1337 = vsyncpa [#allocation3], 1
    %s1338 = scalar_lea.sflag [#allocation3], 1
    %1339 = vsyncpa %s1338, 1

</llo_original>
